<compile_context>
chip_gen: v5e
topology: v5e:2x2
jax: 0.10.0
libtpu: 0.0.40
codegen_flags: <defaults>
</compile_context>

<pallas_src>
import jax
import jax.numpy as jnp
from jax.experimental import pallas as pl
from jax.experimental.pallas import tpu as pltpu

LANE = 128


def _round_up(n, m):
    return ((n + m - 1) // m) * m


def _choose_block_rows(B):
    # Large tiles amortize per-grid-step overhead (measured: 128-row tiles hit
    # ~29% of HBM roofline vs ~85% at 512); keep tiles modest for small B so
    # the grid still has >= 2 steps for v7x's two TensorCores.
    if B <= 256:
        tb = 128
    elif B <= 1024:
        tb = 256
    else:
        tb = 512
    # Never use a tile (much) larger than the batch itself; keep 8-divisible.
    return min(tb, max(8, _round_up(B, 8)))


def dpg_kernel(x_ref, w1t_ref, b1_ref, w2t_ref, b2_ref, o_ref):
    # fc1: bf16 MXU matmul with f32 accumulate; bias add + ReLU on the VPU in f32.
    h = jnp.dot(x_ref[...], w1t_ref[...], preferred_element_type=jnp.float32)
    h = jnp.maximum(h + b1_ref[...], 0.0)                       # [TB, H] + [1, H]
    # fc2: cast activation to bf16 for the MXU (f32 accumulate); tanh on EUP in f32.
    y = jnp.dot(h.astype(jnp.bfloat16), w2t_ref[...],
                preferred_element_type=jnp.float32)
    o_ref[...] = jnp.tanh(y + b2_ref[...]).astype(o_ref.dtype)  # lane-dense store


def dpg_forward(x, w1, b1, w2, b2, *, block_rows=None, slice_output=True):
    """x: [B, din] f32; w1: [H, din]; b1: [H]; w2: [dout, H]; b2: [dout].

    Returns [B, dout] f32 (or the lane-padded [B, dout_p] slab if
    slice_output=False, letting the consumer fuse the column slice).
    """
    B, din = x.shape
    H = w1.shape[0]
    dout = w2.shape[0]
    dout_p = _round_up(dout, LANE)

    # One-time layout plumbing (free under jit):
    #   - pre-transpose weights (kernel never transposes),
    #   - bf16 MXU inputs (halves weight/x DMA; f32 accumulate in-kernel),
    #   - pad dout to a multiple of 128 for a lane-dense output slab,
    #   - biases stay f32 (elementwise path is f32 everywhere, v5e-safe).
    x_bf = x.astype(jnp.bfloat16)
    w1_t = w1.T.astype(jnp.bfloat16)                                   # [din, H]
    w2_tp = jnp.zeros((H, dout_p), jnp.bfloat16).at[:, :dout].set(
        w2.T.astype(jnp.bfloat16))                                     # [H, dout_p]
    b1r = b1.reshape(1, H).astype(jnp.float32)
    b2r = jnp.zeros((1, dout_p), jnp.float32).at[0, :dout].set(b2)

    TB = _choose_block_rows(B) if block_rows is None else block_rows
    grid = (pl.cdiv(B, TB),)   # no batch padding: trailing partial block is masked

    flops = 2 * B * din * H + 2 * B * H * dout_p
    bytes_accessed = (2 * (B * din + din * H + H * dout_p)      # bf16 inputs
                      + 4 * (H + dout_p + B * dout_p))          # f32 biases + output

    out = pl.pallas_call(
        dpg_kernel,
        out_shape=jax.ShapeDtypeStruct((B, dout_p), jnp.float32),
        grid=grid,
        in_specs=[
            pl.BlockSpec((TB, din), lambda i: (i, 0)),     # x tile marches over rows
            pl.BlockSpec((din, H), lambda i: (0, 0)),      # weights stay VMEM-resident
            pl.BlockSpec((1, H), lambda i: (0, 0)),
            pl.BlockSpec((H, dout_p), lambda i: (0, 0)),
            pl.BlockSpec((1, dout_p), lambda i: (0, 0)),
        ],
        out_specs=pl.BlockSpec((TB, dout_p), lambda i: (i, 0)),
        compiler_params=pltpu.CompilerParams(
            dimension_semantics=("parallel",),             # shard rows across TCs (v7x)
        ),
        cost_estimate=pl.CostEstimate(
            flops=flops,
            transcendentals=B * dout_p,
            bytes_accessed=bytes_accessed,
        ),
    )(x_bf, w1_t, b1r, w2_tp, b2r)

    if slice_output:
        return out[:, :dout]   # only lane padding to strip; no batch padding exists
    return out


def init_params(key, din=11, hidden_dim=128, dout=11):
    """Deterministic init mimicking nn.Linear's U(-1/sqrt(fan_in), 1/sqrt(fan_in))."""
    k1, k2, k3, k4 = jax.random.split(key, 4)
    bound1 = 1.0 / jnp.sqrt(jnp.float32(din))
    bound2 = 1.0 / jnp.sqrt(jnp.float32(hidden_dim))
    w1 = jax.random.uniform(k1, (hidden_dim, din), jnp.float32, -bound1, bound1)
    b1 = jax.random.uniform(k2, (hidden_dim,), jnp.float32, -bound1, bound1)
    w2 = jax.random.uniform(k3, (dout, hidden_dim), jnp.float32, -bound2, bound2)
    b2 = jax.random.uniform(k4, (dout,), jnp.float32, -bound2, bound2)
    return w1, b1, w2, b2


if __name__ == "__main__":
    key = jax.random.PRNGKey(0)
    kx, kx2, kp = jax.random.split(key, 3)

    # Module defaults: din=11, hidden_dim=128, dout=11.
    # Batch a few hundred "agents" so the grid (2 steps of 128 rows) is exercised.
    B, din, hidden_dim, dout = 256, 11, 128, 11
    x = jax.random.normal(kx, (B, din), jnp.float32)
    w1, b1, w2, b2 = init_params(kp, din, hidden_dim, dout)

    fwd = jax.jit(dpg_forward)
    out = jax.block_until_ready(fwd(x, w1, b1, w2, b2))

    # Pure-JAX f32 reference; tolerance loosened for the bf16 MXU inputs.
    ref = jnp.tanh(jnp.maximum(x @ w1.T + b1, 0.0) @ w2.T + b2)
    assert out.shape == (B, dout)
    assert jnp.allclose(out, ref, atol=3e-2, rtol=3e-2), float(jnp.max(jnp.abs(out - ref)))

    # Also exercise the no-padding path with a trailing partial row block.
    B2 = 200
    x2 = jax.random.normal(kx2, (B2, din), jnp.float32)
    out2 = jax.block_until_ready(dpg_forward(x2, w1, b1, w2, b2, block_rows=128))
    ref2 = jnp.tanh(jnp.maximum(x2 @ w1.T + b1, 0.0) @ w2.T + b2)
    assert out2.shape == (B2, dout)
    assert jnp.allclose(out2, ref2, atol=3e-2, rtol=3e-2)

    print("KERNEL_OK")
</pallas_src>

<mosaic_0001>
module attributes {stable_mosaic.version = 11 : i64} {
  func.func @dpg_kernel(%arg0: i32, %arg1: memref<128x11xbf16, #tpu.memory_space<vmem>>, %arg2: memref<11x128xbf16, #tpu.memory_space<vmem>>, %arg3: memref<1x128xf32, #tpu.memory_space<vmem>>, %arg4: memref<128x128xbf16, #tpu.memory_space<vmem>>, %arg5: memref<1x128xf32, #tpu.memory_space<vmem>>, %arg6: memref<128x128xf32, #tpu.memory_space<vmem>>) attributes {dimension_semantics = [#tpu.dimension_semantics<parallel>], iteration_bounds = array<i64: 2>, scalar_prefetch = 0 : i64, scratch_operands = 0 : i64, tpu.core_type = #tpu.core_type<tc>, window_params = [{transform_indices = @transform_0, window_bounds = array<i64: 128, 11>}, {pipeline_mode = #tpu.pipeline_mode<synchronous>, transform_indices = @transform_1, window_bounds = array<i64: 11, 128>}, {pipeline_mode = #tpu.pipeline_mode<synchronous>, transform_indices = @transform_2, window_bounds = array<i64: 1, 128>}, {pipeline_mode = #tpu.pipeline_mode<synchronous>, transform_indices = @transform_3, window_bounds = array<i64: 128, 128>}, {pipeline_mode = #tpu.pipeline_mode<synchronous>, transform_indices = @transform_4, window_bounds = array<i64: 1, 128>}, {transform_indices = @transform_5, window_bounds = array<i64: 128, 128>}]} {
    %c0 = arith.constant 0 : index
    %c0_0 = arith.constant 0 : index
    %0 = vector.load %arg1[%c0, %c0_0] : memref<128x11xbf16, #tpu.memory_space<vmem>>, vector<128x11xbf16>
    %c0_1 = arith.constant 0 : index
    %c0_2 = arith.constant 0 : index
    %1 = vector.load %arg2[%c0_1, %c0_2] : memref<11x128xbf16, #tpu.memory_space<vmem>>, vector<11x128xbf16>
    %cst = arith.constant dense<0.000000e+00> : vector<128x128xf32>
    %2 = tpu.matmul %0, %1, %cst {dimension_numbers = #tpu.dot_dimension_numbers<[1], [0], [0], [1], [0, 0, 1, 1], [], []>} : vector<128x11xbf16>, vector<11x128xbf16>, vector<128x128xf32> -> vector<128x128xf32>
    %c0_3 = arith.constant 0 : index
    %c0_4 = arith.constant 0 : index
    %3 = vector.load %arg3[%c0_3, %c0_4] : memref<1x128xf32, #tpu.memory_space<vmem>>, vector<1x128xf32>
    %4 = vector.broadcast %3 : vector<1x128xf32> to vector<128x128xf32>
    %5 = arith.addf %2, %4 : vector<128x128xf32>
    %cst_5 = arith.constant 0.000000e+00 : f32
    %6 = vector.broadcast %cst_5 : f32 to vector<128x128xf32>
    %7 = arith.maximumf %5, %6 : vector<128x128xf32>
    %8 = arith.truncf %7 : vector<128x128xf32> to vector<128x128xbf16>
    %c0_6 = arith.constant 0 : index
    %c0_7 = arith.constant 0 : index
    %9 = vector.load %arg4[%c0_6, %c0_7] : memref<128x128xbf16, #tpu.memory_space<vmem>>, vector<128x128xbf16>
    %cst_8 = arith.constant dense<0.000000e+00> : vector<128x128xf32>
    %10 = tpu.matmul %8, %9, %cst_8 {dimension_numbers = #tpu.dot_dimension_numbers<[1], [0], [0], [1], [0, 0, 1, 1], [], []>} : vector<128x128xbf16>, vector<128x128xbf16>, vector<128x128xf32> -> vector<128x128xf32>
    %c0_9 = arith.constant 0 : index
    %c0_10 = arith.constant 0 : index
    %11 = vector.load %arg5[%c0_9, %c0_10] : memref<1x128xf32, #tpu.memory_space<vmem>>, vector<1x128xf32>
    %12 = vector.broadcast %11 : vector<1x128xf32> to vector<128x128xf32>
    %13 = arith.addf %10, %12 : vector<128x128xf32>
    %14 = math.tanh %13 : vector<128x128xf32>
    %c0_11 = arith.constant 0 : index
    %c0_12 = arith.constant 0 : index
    %15 = vector.load %arg6[%c0_11, %c0_12] : memref<128x128xf32, #tpu.memory_space<vmem>>, vector<128x128xf32>
    tpu.vector_store %arg6[%c0_11, %c0_12], %14 {strides = array<i32>} : memref<128x128xf32, #tpu.memory_space<vmem>>, vector<128x128xf32>,
    return
  }
  func.func @transform_0(%arg0: i32) -> (i32, i32) {
    %c0_i32 = arith.constant 0 : i32
    %c0_i32_0 = arith.constant 0 : i32
    return %arg0, %c0_i32 : i32, i32
  }
  func.func @transform_1(%arg0: i32) -> (i32, i32) {
    %c0_i32 = arith.constant 0 : i32
    %c0_i32_0 = arith.constant 0 : i32
    %c0_i32_1 = arith.constant 0 : i32
    return %c0_i32, %c0_i32_0 : i32, i32
  }
  func.func @transform_2(%arg0: i32) -> (i32, i32) {
    %c0_i32 = arith.constant 0 : i32
    %c0_i32_0 = arith.constant 0 : i32
    %c0_i32_1 = arith.constant 0 : i32
    return %c0_i32, %c0_i32_0 : i32, i32
  }
  func.func @transform_3(%arg0: i32) -> (i32, i32) {
    %c0_i32 = arith.constant 0 : i32
    %c0_i32_0 = arith.constant 0 : i32
    %c0_i32_1 = arith.constant 0 : i32
    return %c0_i32, %c0_i32_0 : i32, i32
  }
  func.func @transform_4(%arg0: i32) -> (i32, i32) {
    %c0_i32 = arith.constant 0 : i32
    %c0_i32_0 = arith.constant 0 : i32
    %c0_i32_1 = arith.constant 0 : i32
    return %c0_i32, %c0_i32_0 : i32, i32
  }
  func.func @transform_5(%arg0: i32) -> (i32, i32) {
    %c0_i32 = arith.constant 0 : i32
    %c0_i32_0 = arith.constant 0 : i32
    return %arg0, %c0_i32 : i32, i32
  }
}

</mosaic_0001>

<llo_original>
// kernel: dpg_forward.1
$region0: #{dpg_forward.1}
  #allocation0 [shape = 'u32[]', space=smem, size = 0x4, offset = 0x4, fixed_abs, tag = 'smem constant byte address 0x4 - core index']
  #allocation1 [shape = 'u32[72,128]{1,0:T(1,128)}', space=vmem, size = 0x9000, scoped, tag = 'internal scratch']
  %s0 = inlined_call_operand.vmem [shape: bf16[256,11], index: 0, kind: input, shape index: {}]
  %s1 = inlined_call_operand.vmem [shape: bf16[11,128], index: 1, kind: input, shape index: {}]
  %s2 = inlined_call_operand.vmem [shape: f32[1,128], index: 2, kind: input, shape index: {}]
  %s3 = inlined_call_operand.vmem [shape: bf16[128,128], index: 3, kind: input, shape index: {}]
  %s4 = inlined_call_operand.vmem [shape: f32[1,128], index: 4, kind: input, shape index: {}]
  %s5 = inlined_call_operand.vmem [shape: f32[256,128], index: 5, kind: output, shape index: {}]
  %s6 = sld [smem:[#allocation0]]
  $region53: #{dpg_forward.1} parent=0
    _
  %s8 = ssub.s32 1, %s6
  %s9 = scalar_select 0, %s8, %s6
  loop: start=0, step=1, limit=4
  $region2: #{dpg_forward.1} parent=0 // loop_pre_header
    _
  $region3: #{dpg_forward.1} parent=0 // loop_header
    %s11 = sphi 0, %s15
    %p12 = scmp.ge.s32.totalorder %s11, 4
    %s21 = sphi 0, %s23
    %s24 = sphi 0, %s21
    %s25 = sphi 0, %s24
    %s41 = sphi 0, %s25
    %s45 = sphi 0, %s45
    %s47 = sphi 0, %s45
    %s48 = sphi 0, %s47
    %s62 = sphi 0, %s48
    %s66 = sphi 0, %s66
    %s68 = sphi 0, %s66
    %s69 = sphi 0, %s68
    %s83 = sphi 0, %s69
    %s87 = sphi 0, %s87
    %s89 = sphi 0, %s87
    %s90 = sphi 0, %s89
    %s104 = sphi 0, %s90
    %s108 = sphi 0, %s108
    %s110 = sphi 0, %s108
    %s111 = sphi 0, %s110
    %s125 = sphi 0, %s111
    %s131 = sphi 0, %s133
    %s134 = sphi 0, %s131
    %s135 = sphi 0, %s134
    %s151 = sphi 0, %s135
  $region4: #{dpg_forward.1} parent=0 // loop_header_branch
    %14 = sbr.rel (%p12) target = $region8
  $region5: #{dpg_forward.1} parent=0 // loop_body
    %s16 = ssub.s32 %s11, 1
    %s17 = ssub.s32 %s11, 2
    %s18 = sadd.s32 %s11, 1
    %s19 = ssub.s32 %s11, %s18
    %p20 = scmp.eq.s32.totalorder %s19, 0
    %s22 = sadd.s32 %s21, 1
    %s23 = scalar_select %p20, %s21, %s22
    %p26 = pneg %p20
    %p27 = scmp.eq.s32.totalorder %s11, 1
    %p28 = por %p26, %p27
    %p29 = scmp.ne.s32.totalorder %s21, %s24
    %p30 = scmp.eq.s32.totalorder %s11, 0
    %p31 = por %p29, %p30
    %p32 = scmp.ne.s32.totalorder %s21, %s24
    %p33 = scmp.eq.s32.totalorder %s16, 1
    %p34 = por %p32, %p33
    %p35 = scmp.ne.s32.totalorder %s24, %s25
    %p36 = scmp.eq.s32.totalorder %s16, 0
    %p37 = por %p35, %p36
    %p38 = scmp.ne.s32.totalorder %s24, %s25
    %p39 = scmp.eq.s32.totalorder %s17, 1
    %p40 = por %p38, %p39
    %p42 = scmp.ne.s32.totalorder %s25, %s41
    %p43 = scmp.eq.s32.totalorder %s17, 0
    %p44 = por %p42, %p43
    %s46 = sadd.s32 %s45, 1
    %p49 = scmp.eq.s32.totalorder %s11, 1
    %p50 = scmp.ne.s32.totalorder %s45, %s47
    %p51 = scmp.eq.s32.totalorder %s11, 0
    %p52 = por %p50, %p51
    %p53 = scmp.ne.s32.totalorder %s45, %s47
    %p54 = scmp.eq.s32.totalorder %s16, 1
    %p55 = por %p53, %p54
    %p56 = scmp.ne.s32.totalorder %s47, %s48
    %p57 = scmp.eq.s32.totalorder %s16, 0
    %p58 = por %p56, %p57
    %p59 = scmp.ne.s32.totalorder %s47, %s48
    %p60 = scmp.eq.s32.totalorder %s17, 1
    %p61 = por %p59, %p60
    %p63 = scmp.ne.s32.totalorder %s48, %s62
    %p64 = scmp.eq.s32.totalorder %s17, 0
    %p65 = por %p63, %p64
    %s67 = sadd.s32 %s66, 1
    %p70 = scmp.eq.s32.totalorder %s11, 1
    %p71 = scmp.ne.s32.totalorder %s66, %s68
    %p72 = scmp.eq.s32.totalorder %s11, 0
    %p73 = por %p71, %p72
    %p74 = scmp.ne.s32.totalorder %s66, %s68
    %p75 = scmp.eq.s32.totalorder %s16, 1
    %p76 = por %p74, %p75
    %p77 = scmp.ne.s32.totalorder %s68, %s69
    %p78 = scmp.eq.s32.totalorder %s16, 0
    %p79 = por %p77, %p78
    %p80 = scmp.ne.s32.totalorder %s68, %s69
    %p81 = scmp.eq.s32.totalorder %s17, 1
    %p82 = por %p80, %p81
    %p84 = scmp.ne.s32.totalorder %s69, %s83
    %p85 = scmp.eq.s32.totalorder %s17, 0
    %p86 = por %p84, %p85
    %s88 = sadd.s32 %s87, 1
    %p91 = scmp.eq.s32.totalorder %s11, 1
    %p92 = scmp.ne.s32.totalorder %s87, %s89
    %p93 = scmp.eq.s32.totalorder %s11, 0
    %p94 = por %p92, %p93
    %p95 = scmp.ne.s32.totalorder %s87, %s89
    %p96 = scmp.eq.s32.totalorder %s16, 1
    %p97 = por %p95, %p96
    %p98 = scmp.ne.s32.totalorder %s89, %s90
    %p99 = scmp.eq.s32.totalorder %s16, 0
    %p100 = por %p98, %p99
    %p101 = scmp.ne.s32.totalorder %s89, %s90
    %p102 = scmp.eq.s32.totalorder %s17, 1
    %p103 = por %p101, %p102
    %p105 = scmp.ne.s32.totalorder %s90, %s104
    %p106 = scmp.eq.s32.totalorder %s17, 0
    %p107 = por %p105, %p106
    %s109 = sadd.s32 %s108, 1
    %p112 = scmp.eq.s32.totalorder %s11, 1
    %p113 = scmp.ne.s32.totalorder %s108, %s110
    %p114 = scmp.eq.s32.totalorder %s11, 0
    %p115 = por %p113, %p114
    %p116 = scmp.ne.s32.totalorder %s108, %s110
    %p117 = scmp.eq.s32.totalorder %s16, 1
    %p118 = por %p116, %p117
    %p119 = scmp.ne.s32.totalorder %s110, %s111
    %p120 = scmp.eq.s32.totalorder %s16, 0
    %p121 = por %p119, %p120
    %p122 = scmp.ne.s32.totalorder %s110, %s111
    %p123 = scmp.eq.s32.totalorder %s17, 1
    %p124 = por %p122, %p123
    %p126 = scmp.ne.s32.totalorder %s111, %s125
    %p127 = scmp.eq.s32.totalorder %s17, 0
    %p128 = por %p126, %p127
    %s129 = ssub.s32 %s11, %s18
    %p130 = scmp.eq.s32.totalorder %s129, 0
    %s132 = sadd.s32 %s131, 1
    %s133 = scalar_select %p130, %s131, %s132
    %p136 = pneg %p130
    %p137 = scmp.eq.s32.totalorder %s11, 1
    %p138 = por %p136, %p137
    %p139 = scmp.ne.s32.totalorder %s131, %s134
    %p140 = scmp.eq.s32.totalorder %s11, 0
    %p141 = por %p139, %p140
    %p142 = scmp.ne.s32.totalorder %s131, %s134
    %p143 = scmp.eq.s32.totalorder %s16, 1
    %p144 = por %p142, %p143
    %p145 = scmp.ne.s32.totalorder %s134, %s135
    %p146 = scmp.eq.s32.totalorder %s16, 0
    %p147 = por %p145, %p146
    %p148 = scmp.ne.s32.totalorder %s134, %s135
    %p149 = scmp.eq.s32.totalorder %s17, 1
    %p150 = por %p148, %p149
    %p152 = scmp.ne.s32.totalorder %s135, %s151
    %p153 = scmp.eq.s32.totalorder %s17, 0
    %p154 = por %p152, %p153
    %p155 = scmp.le.s32.totalorder 1, %s11
    %p156 = scmp.lt.s32.totalorder %s11, 3
    %p157 = pnand %p155, %p156
    %p158 = pneg %p157
    // Predicated region
    $region9: #{dpg_forward.1} parent=5 // pred_check
      _
    $region10: #{dpg_forward.1} parent=5 // pred_check_branch
      %160 = sbr.rel (%p157) target = $region12
    $region11: #{dpg_forward.1} parent=5 // pred_region
      %s161 = ssub.s32 %s11, 1
      // Predicated region
      $region13: #{dpg_forward.1} parent=11 // pred_check
        %p162 = pneg %p58
      $region14: #{dpg_forward.1} parent=11 // pred_check_branch
        %164 = sbr.rel (%p162) target = $region16
      $region15: #{dpg_forward.1} parent=11 // pred_region
        _
      $region16: #{dpg_forward.1} parent=11 // pred_fallthru
        _
      // Predicated region
      $region17: #{dpg_forward.1} parent=11 // pred_check
        %p165 = pneg %p79
      $region18: #{dpg_forward.1} parent=11 // pred_check_branch
        %167 = sbr.rel (%p165) target = $region20
      $region19: #{dpg_forward.1} parent=11 // pred_region
        _
      $region20: #{dpg_forward.1} parent=11 // pred_fallthru
        _
      // Predicated region
      $region21: #{dpg_forward.1} parent=11 // pred_check
        %p168 = pneg %p100
      $region22: #{dpg_forward.1} parent=11 // pred_check_branch
        %170 = sbr.rel (%p168) target = $region24
      $region23: #{dpg_forward.1} parent=11 // pred_region
        _
      $region24: #{dpg_forward.1} parent=11 // pred_fallthru
        _
      // Predicated region
      $region25: #{dpg_forward.1} parent=11 // pred_check
        %p171 = pneg %p121
      $region26: #{dpg_forward.1} parent=11 // pred_check_branch
        %173 = sbr.rel (%p171) target = $region28
      $region27: #{dpg_forward.1} parent=11 // pred_region
        _
      $region28: #{dpg_forward.1} parent=11 // pred_fallthru
        _
    $region12: #{dpg_forward.1} parent=5 // pred_fallthru
      _
    %p174 = scmp.lt.s32.totalorder %s11, 2
    // Predicated region
    $region29: #{dpg_forward.1} parent=5 // pred_check
      %p175 = pneg %p174
    $region30: #{dpg_forward.1} parent=5 // pred_check_branch
      %177 = sbr.rel (%p175) target = $region32
    $region31: #{dpg_forward.1} parent=5 // pred_region
      // Predicated region
      $region33: #{dpg_forward.1} parent=31 // pred_check
        %p178 = pneg %p31
      $region34: #{dpg_forward.1} parent=31 // pred_check_branch
        %180 = sbr.rel (%p178) target = $region36
      $region35: #{dpg_forward.1} parent=31 // pred_region
        %s181 = smul.u32 16, %s11
        %p182 = scmp.lt.s32.totalorder %s181, 31
        %s183 = scalar_select %p182, %s181, 31
        %s184 = smul.addr %s183, 4
        %s185 = scalar_lea.vmem %s0, %s184
        %s186 = smul.u32 16, %s11
      $region36: #{dpg_forward.1} parent=31 // pred_fallthru
        _
    $region32: #{dpg_forward.1} parent=5 // pred_fallthru
      _
    %p187 = scmp.le.s32.totalorder 1, %s11
    %p188 = scmp.lt.s32.totalorder %s11, 3
    %p189 = pnand %p187, %p188
    %p190 = pneg %p189
    // Predicated region
    $region37: #{dpg_forward.1} parent=5 // pred_check
      _
    $region38: #{dpg_forward.1} parent=5 // pred_check_branch
      %192 = sbr.rel (%p189) target = $region40
    $region39: #{dpg_forward.1} parent=5 // pred_region
      %s193 = ssub.s32 %s11, 1
      %s194 = smul.u32 16, %s16
      %p195 = scmp.lt.s32.totalorder %s194, 31
      %s196 = scalar_select %p195, %s194, 31
      %s197 = smul.addr %s196, 4
      %s198 = scalar_lea.vmem %s0, %s197
      %p199 = pneg %p37
      %p200 = pneg %p34
      %p201 = pneg %p58
      %p202 = pneg %p55
      %p203 = pneg %p79
      %p204 = pneg %p76
      %p205 = pneg %p100
      %p206 = pneg %p97
      %p207 = pneg %p121
      %p208 = pneg %p118
      %p209 = pneg %p147
      %p210 = pneg %p144
      %s211 = smul.u32 16, %s16
      %p212 = scmp.lt.s32.totalorder %s211, 31
      %s213 = scalar_select %p212, %s211, 31
      %s214 = smul.addr %s213, 8
      %s215 = scalar_lea.vmem %s5, %s214
      %s216 = smul.u32 16, %s16
      %p217 = scmp.lt.s32.totalorder %s216, 31
      %s218 = scalar_select %p217, %s216, 31
      %s219 = smul.addr %s218, 4
      %s220 = scalar_lea.vmem %s0, %s219
      %s221 = smul.u32 16, %s16
      %s222 = smul.u32 16, %s16
      %p223 = scmp.lt.s32.totalorder %s222, 31
      %s224 = scalar_select %p223, %s222, 31
      %s225 = smul.addr %s224, 8
      %s226 = scalar_lea.vmem %s5, %s225
      %s227 = smul.u32 16, %s16
      %v229 = vld [vmem:[%s220] sm:$0xf]
      %v230 = vld [vmem:[%s220 + $0x4] sm:$0xf]
      %v231 = vld [vmem:[%s220 + $0x8] sm:$0xf]
      %v232 = vld [vmem:[%s220 + $0xc] sm:$0xf]
      %v233 = vld [vmem:[%s220 + $0x10] sm:$0xf]
      %v234 = vld [vmem:[%s220 + $0x14] sm:$0xf]
      %v235 = vld [vmem:[%s220 + $0x18] sm:$0xf]
      %v236 = vld [vmem:[%s220 + $0x1c] sm:$0xf]
      %v237 = vld [vmem:[%s220 + $0x20] sm:$0xf]
      %v238 = vld [vmem:[%s220 + $0x24] sm:$0xf]
      %v239 = vld [vmem:[%s220 + $0x28] sm:$0xf]
      %v240 = vld [vmem:[%s220 + $0x2c] sm:$0xf]
      %v241 = vld [vmem:[%s220 + $0x30] sm:$0xf]
      %v242 = vld [vmem:[%s220 + $0x34] sm:$0xf]
      %v243 = vld [vmem:[%s220 + $0x38] sm:$0xf]
      %v244 = vld [vmem:[%s220 + $0x3c] sm:$0xf]
      %v245 = vld [vmem:[%s1] sm:$0xf]
      %v246 = vld [vmem:[%s1 + $0x4] sm:$0x3]
      %v247 = vld [vmem:[%s2] sm:$0x1]
      %v249 = vperm.slane %v247, 0
      %v267 = vunpack.c.l.b16 %v229
      %v268 = vunpack.c.l.b16 %v230
      %v269 = vunpack.c.l.b16 %v231
      %v270 = vunpack.c.l.b16 %v232
      %v271 = vunpack.c.l.b16 %v233
      %v272 = vunpack.c.l.b16 %v234
      %v273 = vunpack.c.l.b16 %v235
      %v274 = vunpack.c.l.b16 %v236
      %v275 = vunpack.c.l.b16 %v237
      %v276 = vunpack.c.l.b16 %v238
      %v277 = vunpack.c.l.b16 %v239
      %v278 = vunpack.c.l.b16 %v240
      %v279 = vunpack.c.l.b16 %v241
      %v280 = vunpack.c.l.b16 %v242
      %v281 = vunpack.c.l.b16 %v243
      %v282 = vunpack.c.l.b16 %v244
      %v283 = vpack.c.b16 %v268, %v267
      %v284 = vpack.c.b16 %v270, %v269
      %v285 = vpack.c.b16 %v272, %v271
      %v286 = vpack.c.b16 %v274, %v273
      %v287 = vpack.c.b16 %v276, %v275
      %v288 = vpack.c.b16 %v278, %v277
      %v289 = vpack.c.b16 %v280, %v279
      %v290 = vpack.c.b16 %v282, %v281
      %v293 = vunpack.c.l.b16 %v245
      %v294 = vunpack.c.l.b16 %v246
      %v295 = vpack.c.b16 %v294, %v293
      %vm296 = vcmask 89088
      %v298 = vsel %vm296, %v283, 0
      %v301 = vsel %vm296, %v284, 0
      %v304 = vsel %vm296, %v285, 0
      %v307 = vsel %vm296, %v286, 0
      %v310 = vsel %vm296, %v287, 0
      %v313 = vsel %vm296, %v288, 0
      %v316 = vsel %vm296, %v289, 0
      %v319 = vsel %vm296, %v290, 0
      %vm321 = vcmask 1044480
      %vm322 = vcmask 1045504
      %v323 = vsel %vm321, 4294967295, 65535
      %v324 = vsel %vm322, %v323, 0
      %v326 = vand.u32 %v295, %v324
      %328 = vmatpush.bf16.msra.mxu0 0
      %329 = vmatpush.bf16.msra.mxu0 0
      %330 = vmatpush.bf16.msra.mxu0 0
      %331 = vmatpush.bf16.msra.mxu0 0
      %332 = vmatpush.bf16.msra.mxu0 0
      %333 = vmatpush.bf16.msra.mxu0 0
      %334 = vmatpush.bf16.msra.mxu0 0
      %335 = vmatpush.bf16.msra.mxu0 %v326
      %336 = vmatmul.bf16.gmra.mxu0 %v298
      %v337 = vpop.f32.mrf.mxu0
      %v338 = vadd.f32 %v249, %v337
      %v339 = vpop.f32.mrf.mxu0
      %v340 = vadd.f32 %v249, %v339
      %341 = vmatmul.bf16.gmra.mxu0 %v301
      %v342 = vpop.f32.mrf.mxu0
      %v343 = vadd.f32 %v249, %v342
      %v344 = vpop.f32.mrf.mxu0
      %v345 = vadd.f32 %v249, %v344
      %346 = vmatmul.bf16.gmra.mxu0 %v304
      %v347 = vpop.f32.mrf.mxu0
      %v348 = vadd.f32 %v249, %v347
      %v349 = vpop.f32.mrf.mxu0
      %v350 = vadd.f32 %v249, %v349
      %351 = vmatmul.bf16.gmra.mxu0 %v307
      %v352 = vpop.f32.mrf.mxu0
      %v353 = vadd.f32 %v249, %v352
      %v354 = vpop.f32.mrf.mxu0
      %v355 = vadd.f32 %v249, %v354
      %356 = vmatmul.bf16.gmra.mxu0 %v310
      %v357 = vpop.f32.mrf.mxu0
      %v358 = vadd.f32 %v249, %v357
      %v359 = vpop.f32.mrf.mxu0
      %v360 = vadd.f32 %v249, %v359
      %361 = vmatmul.bf16.gmra.mxu0 %v313
      %v362 = vpop.f32.mrf.mxu0
      %v363 = vadd.f32 %v249, %v362
      %v364 = vpop.f32.mrf.mxu0
      %v365 = vadd.f32 %v249, %v364
      %366 = vmatmul.bf16.gmra.mxu0 %v316
      %v367 = vpop.f32.mrf.mxu0
      %v368 = vadd.f32 %v249, %v367
      %v369 = vpop.f32.mrf.mxu0
      %v370 = vadd.f32 %v249, %v369
      %371 = vmatmul.bf16.gmra.mxu0 %v319
      %v372 = vpop.f32.mrf.mxu0
      %v373 = vadd.f32 %v249, %v372
      %v374 = vpop.f32.mrf.mxu0
      %v375 = vadd.f32 %v249, %v374
      %376 = vdwg.mxu0
      %v377 = vmax.f32 %v338, 0.0
      %v378 = vmax.f32 %v340, 0.0
      %v379 = vmax.f32 %v343, 0.0
      %v380 = vmax.f32 %v345, 0.0
      %v381 = vmax.f32 %v348, 0.0
      %v382 = vmax.f32 %v350, 0.0
      %v383 = vmax.f32 %v353, 0.0
      %v384 = vmax.f32 %v355, 0.0
      %v385 = vmax.f32 %v358, 0.0
      %v386 = vmax.f32 %v360, 0.0
      %v387 = vmax.f32 %v363, 0.0
      %v388 = vmax.f32 %v365, 0.0
      %v389 = vmax.f32 %v368, 0.0
      %v390 = vmax.f32 %v370, 0.0
      %v391 = vmax.f32 %v373, 0.0
      %v392 = vmax.f32 %v375, 0.0
      %v393 = vpack.c.bf16 %v378, %v377
      %v394 = vpack.c.bf16 %v380, %v379
      %v395 = vpack.c.bf16 %v382, %v381
      %v396 = vpack.c.bf16 %v384, %v383
      %v397 = vpack.c.bf16 %v386, %v385
      %v398 = vpack.c.bf16 %v388, %v387
      %v399 = vpack.c.bf16 %v390, %v389
      %v400 = vpack.c.bf16 %v392, %v391
      %v401 = vld [vmem:[%s3] sm:$0xf]
      %v402 = vld [vmem:[%s3 + $0x4] sm:$0xf]
      %v403 = vld [vmem:[%s3 + $0x8] sm:$0xf]
      %v404 = vld [vmem:[%s3 + $0xc] sm:$0xf]
      %v405 = vld [vmem:[%s3 + $0x10] sm:$0xf]
      %v406 = vld [vmem:[%s3 + $0x14] sm:$0xf]
      %v407 = vld [vmem:[%s3 + $0x18] sm:$0xf]
      %v408 = vld [vmem:[%s3 + $0x1c] sm:$0xf]
      %v409 = vld [vmem:[%s3 + $0x20] sm:$0xf]
      %v410 = vld [vmem:[%s3 + $0x24] sm:$0xf]
      %v411 = vld [vmem:[%s3 + $0x28] sm:$0xf]
      %v412 = vld [vmem:[%s3 + $0x2c] sm:$0xf]
      %v413 = vld [vmem:[%s3 + $0x30] sm:$0xf]
      %v414 = vld [vmem:[%s3 + $0x34] sm:$0xf]
      %v415 = vld [vmem:[%s3 + $0x38] sm:$0xf]
      %v416 = vld [vmem:[%s3 + $0x3c] sm:$0xf]
      %v417 = vld [vmem:[%s4] sm:$0x1]
      %v419 = vperm.slane %v417, 0
      %v437 = vunpack.c.l.b16 %v401
      %v438 = vunpack.c.l.b16 %v402
      %v439 = vunpack.c.l.b16 %v403
      %v440 = vunpack.c.l.b16 %v404
      %v441 = vunpack.c.l.b16 %v405
      %v442 = vunpack.c.l.b16 %v406
      %v443 = vunpack.c.l.b16 %v407
      %v444 = vunpack.c.l.b16 %v408
      %v445 = vunpack.c.l.b16 %v409
      %v446 = vunpack.c.l.b16 %v410
      %v447 = vunpack.c.l.b16 %v411
      %v448 = vunpack.c.l.b16 %v412
      %v449 = vunpack.c.l.b16 %v413
      %v450 = vunpack.c.l.b16 %v414
      %v451 = vunpack.c.l.b16 %v415
      %v452 = vunpack.c.l.b16 %v416
      %v453 = vpack.c.b16 %v438, %v437
      %v454 = vpack.c.b16 %v440, %v439
      %v455 = vpack.c.b16 %v442, %v441
      %v456 = vpack.c.b16 %v444, %v443
      %v457 = vpack.c.b16 %v446, %v445
      %v458 = vpack.c.b16 %v448, %v447
      %v459 = vpack.c.b16 %v450, %v449
      %v460 = vpack.c.b16 %v452, %v451
      %469 = vmatpush.bf16.msra.mxu0 %v460
      %470 = vmatpush.bf16.msra.mxu0 %v459
      %471 = vmatpush.bf16.msra.mxu0 %v458
      %472 = vmatpush.bf16.msra.mxu0 %v457
      %473 = vmatpush.bf16.msra.mxu0 %v456
      %474 = vmatpush.bf16.msra.mxu0 %v455
      %475 = vmatpush.bf16.msra.mxu0 %v454
      %476 = vmatpush.bf16.msra.mxu0 %v453
      %477 = vmatmul.bf16.gmra.mxu0 %v393
      %v478 = vpop.f32.mrf.mxu0
      %v479 = vadd.f32 %v419, %v478
      %v480 = vpop.f32.mrf.mxu0
      %v481 = vadd.f32 %v419, %v480
      %482 = vmatmul.bf16.gmra.mxu0 %v394
      %v483 = vpop.f32.mrf.mxu0
      %v484 = vadd.f32 %v419, %v483
      %v485 = vpop.f32.mrf.mxu0
      %v486 = vadd.f32 %v419, %v485
      %487 = vmatmul.bf16.gmra.mxu0 %v395
      %v488 = vpop.f32.mrf.mxu0
      %v489 = vadd.f32 %v419, %v488
      %v490 = vpop.f32.mrf.mxu0
      %v491 = vadd.f32 %v419, %v490
      %492 = vmatmul.bf16.gmra.mxu0 %v396
      %v493 = vpop.f32.mrf.mxu0
      %v494 = vadd.f32 %v419, %v493
      %v495 = vpop.f32.mrf.mxu0
      %v496 = vadd.f32 %v419, %v495
      %497 = vmatmul.bf16.gmra.mxu0 %v397
      %v498 = vpop.f32.mrf.mxu0
      %v499 = vadd.f32 %v419, %v498
      %v500 = vpop.f32.mrf.mxu0
      %v501 = vadd.f32 %v419, %v500
      %502 = vmatmul.bf16.gmra.mxu0 %v398
      %v503 = vpop.f32.mrf.mxu0
      %v504 = vadd.f32 %v419, %v503
      %v505 = vpop.f32.mrf.mxu0
      %v506 = vadd.f32 %v419, %v505
      %507 = vmatmul.bf16.gmra.mxu0 %v399
      %v508 = vpop.f32.mrf.mxu0
      %v509 = vadd.f32 %v419, %v508
      %v510 = vpop.f32.mrf.mxu0
      %v511 = vadd.f32 %v419, %v510
      %512 = vmatmul.bf16.gmra.mxu0 %v400
      %v513 = vpop.f32.mrf.mxu0
      %v514 = vadd.f32 %v419, %v513
      %v515 = vpop.f32.mrf.mxu0
      %v516 = vadd.f32 %v419, %v515
      %517 = vdwg.mxu0
      %v518 = vtanh.pop %v479
      %v519 = vtanh.pop %v481
      %v520 = vtanh.pop %v484
      %v521 = vtanh.pop %v486
      %v522 = vtanh.pop %v489
      %v523 = vtanh.pop %v491
      %v524 = vtanh.pop %v494
      %v525 = vtanh.pop %v496
      %v526 = vtanh.pop %v499
      %v527 = vtanh.pop %v501
      %v528 = vtanh.pop %v504
      %v529 = vtanh.pop %v506
      %v530 = vtanh.pop %v509
      %v531 = vtanh.pop %v511
      %v532 = vtanh.pop %v514
      %v533 = vtanh.pop %v516
      %534 = vst [vmem:[%s226] sm:$0xff] %v518
      %535 = vst [vmem:[%s226 + $0x8] sm:$0xff] %v519
      %536 = vst [vmem:[%s226 + $0x10] sm:$0xff] %v520
      %537 = vst [vmem:[%s226 + $0x18] sm:$0xff] %v521
      %538 = vst [vmem:[%s226 + $0x20] sm:$0xff] %v522
      %539 = vst [vmem:[%s226 + $0x28] sm:$0xff] %v523
      %540 = vst [vmem:[%s226 + $0x30] sm:$0xff] %v524
      %541 = vst [vmem:[%s226 + $0x38] sm:$0xff] %v525
      %542 = vst [vmem:[%s226 + $0x40] sm:$0xff] %v526
      %543 = vst [vmem:[%s226 + $0x48] sm:$0xff] %v527
      %544 = vst [vmem:[%s226 + $0x50] sm:$0xff] %v528
      %545 = vst [vmem:[%s226 + $0x58] sm:$0xff] %v529
      %546 = vst [vmem:[%s226 + $0x60] sm:$0xff] %v530
      %547 = vst [vmem:[%s226 + $0x68] sm:$0xff] %v531
      %548 = vst [vmem:[%s226 + $0x70] sm:$0xff] %v532
      %549 = vst [vmem:[%s226 + $0x78] sm:$0xff] %v533
      %s550 = smul.u32 16, %s16
      %p551 = scmp.lt.s32.totalorder %s550, 31
      %s552 = scalar_select %p551, %s550, 31
      %s553 = smul.addr %s552, 8
      %s554 = scalar_lea.vmem %s5, %s553
      // Predicated region
      $region41: #{dpg_forward.1} parent=39 // pred_check
        %p555 = pneg %p144
      $region42: #{dpg_forward.1} parent=39 // pred_check_branch
        %557 = sbr.rel (%p555) target = $region44
      $region43: #{dpg_forward.1} parent=39 // pred_region
        %s558 = smul.u32 16, %s16
      $region44: #{dpg_forward.1} parent=39 // pred_fallthru
        _
    $region40: #{dpg_forward.1} parent=5 // pred_fallthru
      _
    %p559 = scmp.le.s32.totalorder 2, %s11
    // Predicated region
    $region45: #{dpg_forward.1} parent=5 // pred_check
      %p560 = pneg %p559
    $region46: #{dpg_forward.1} parent=5 // pred_check_branch
      %562 = sbr.rel (%p560) target = $region48
    $region47: #{dpg_forward.1} parent=5 // pred_region
      %s563 = ssub.s32 %s11, 2
      // Predicated region
      $region49: #{dpg_forward.1} parent=47 // pred_check
        %p564 = pneg %p150
      $region50: #{dpg_forward.1} parent=47 // pred_check_branch
        %566 = sbr.rel (%p564) target = $region52
      $region51: #{dpg_forward.1} parent=47 // pred_region
        %s567 = smul.u32 16, %s17
        %p568 = scmp.lt.s32.totalorder %s567, 31
        %s569 = scalar_select %p568, %s567, 31
        %s570 = smul.addr %s569, 8
        %s571 = scalar_lea.vmem %s5, %s570
      $region52: #{dpg_forward.1} parent=47 // pred_fallthru
        _
    $region48: #{dpg_forward.1} parent=5 // pred_fallthru
      _
  $region6: #{dpg_forward.1} parent=0 // loop_footer
    %s15 = sadd.s32 1, %s11
  $region7: #{dpg_forward.1} parent=0 // loop_footer_branch
    %10 = sbr.rel target = $region3
  $region8: #{dpg_forward.1} parent=0 // loop_exit
    _

</llo_original>
